<compile_context>
chip_gen: v7x
topology: tpu7x:2x2x1
jax: 0.10.0
libtpu: 0.0.40
codegen_flags: <defaults>
</compile_context>

<pallas_src>
import functools

import jax
import jax.numpy as jnp
from jax import lax
from jax.experimental import pallas as pl
from jax.experimental.pallas import tpu as pltpu


def _ce2d_kernel(x_ref, t_ref, o_ref, acc_loss, acc_cnt, *, C, S, TS, ignore_index):
    n = pl.program_id(0)
    s = pl.program_id(1)

    @pl.when((n == 0) & (s == 0))
    def _():
        acc_loss[...] = jnp.zeros_like(acc_loss)
        acc_cnt[...] = jnp.zeros_like(acc_cnt)

    x = x_ref[...].astype(jnp.float32)   # (C, TS): classes on sublanes, pixels on lanes
    t = t_ref[...]                       # (1, TS) int32

    # Column validity: in-bounds spatial position (ragged last tile) and not ignore_index.
    col = s * TS + lax.broadcasted_iota(jnp.int32, (1, TS), 1)
    valid = (col < S) & (t != ignore_index)

    # log-sum-exp over the (small) class axis -- per-pixel, lane-parallel.
    m = jnp.max(x, axis=0, keepdims=True)                                  # (1, TS)
    lse = m + jnp.log(jnp.sum(jnp.exp(x - m), axis=0, keepdims=True))      # (1, TS)

    # x[target] via C lane-dense compare/selects (no dynamic gather needed).
    cls = lax.broadcasted_iota(jnp.int32, (C, TS), 0)
    picked = jnp.sum(jnp.where(cls == t, x, 0.0), axis=0, keepdims=True)   # (1, TS)

    # Elementwise accumulation into vreg-shaped accumulators (no per-step
    # scalar reduction); padded / ignored columns contribute nothing.
    acc_loss[...] += jnp.where(valid, lse - picked, 0.0)
    acc_cnt[...] += valid.astype(jnp.float32)

    @pl.when((n == pl.num_programs(0) - 1) & (s == pl.num_programs(1) - 1))
    def _():
        loss_sum = jnp.sum(acc_loss[...], keepdims=True)   # (1, 1)
        cnt_sum = jnp.sum(acc_cnt[...], keepdims=True)     # (1, 1)
        o_ref[...] = loss_sum / cnt_sum


def cross_entropy_loss_2d(outputs, targets, *, ignore_index=-100):
    """outputs: (N, C, H, W) float (f32 or bf16); targets: (N, H, W) int. Returns scalar f32."""
    N, C, H, W = outputs.shape
    S = H * W

    # Free, contiguous reshapes only -- no transpose, no extra HBM pass.
    x = outputs.reshape(N, C, S)
    t = targets.reshape(N, 1, S).astype(jnp.int32)

    # Spatial tile: lane-dense, multiple of 128.  Sized so the double-buffered
    # logits tile is ~8 MiB max (fits comfortably in v7x's 64 MiB VMEM next to
    # the target tiles and (1, TS) accumulators), big enough that per-step
    # pipeline overhead is amortized even for C ~ 20, H = W = 512 workloads.
    itemsize = jnp.dtype(outputs.dtype).itemsize
    budget_bytes = 4 * 1024 * 1024                       # per-buffer x-tile budget
    ts_cap = max(128, (budget_bytes // max(1, C * itemsize)) // 128 * 128)
    TS = int(min(ts_cap, 65536, 128 * pl.cdiv(S, 128)))
    grid = (N, pl.cdiv(S, TS))

    out = pl.pallas_call(
        functools.partial(_ce2d_kernel, C=C, S=S, TS=TS, ignore_index=ignore_index),
        out_shape=jax.ShapeDtypeStruct((1, 1), jnp.float32),
        grid_spec=pltpu.PrefetchScalarGridSpec(
            num_scalar_prefetch=0,
            grid=grid,
            in_specs=[
                # logits: (N, C, S) -> kernel block (C, TS)
                pl.BlockSpec((pl.Squeezed(), C, TS), lambda n, s: (n, 0, s)),
                # targets: (N, 1, S) -> kernel block (1, TS), lane-dense
                pl.BlockSpec((pl.Squeezed(), 1, TS), lambda n, s: (n, 0, s)),
            ],
            out_specs=pl.BlockSpec((1, 1), lambda n, s: (0, 0)),
            scratch_shapes=[
                pltpu.VMEM((1, TS), jnp.float32),   # running per-lane loss sum
                pltpu.VMEM((1, TS), jnp.float32),   # running per-lane valid count
            ],
        ),
        compiler_params=pltpu.CompilerParams(
            dimension_semantics=("arbitrary", "arbitrary"),
            vmem_limit_bytes=32 * 1024 * 1024,
        ),
    )(x, t)
    return out[0, 0]


def _reference(outputs, targets, ignore_index=-100):
    # Pure-JAX reference of NLLLoss(log_softmax(outputs, dim=1), targets), mean reduction.
    logp = jax.nn.log_softmax(outputs.astype(jnp.float32), axis=1)  # (N,C,H,W)
    tgt = targets.astype(jnp.int32)
    safe = jnp.clip(tgt, 0, outputs.shape[1] - 1)
    picked = jnp.take_along_axis(logp, safe[:, None, :, :], axis=1)[:, 0]  # (N,H,W)
    valid = (tgt != ignore_index).astype(jnp.float32)
    return -(picked * valid).sum() / valid.sum()


if __name__ == "__main__":
    key = jax.random.PRNGKey(0)
    k1, k2 = jax.random.split(key)

    N, C, H, W = 2, 4, 16, 16
    outputs = jax.random.normal(k1, (N, C, H, W), dtype=jnp.float32)
    targets = jax.random.randint(k2, (N, H, W), 0, C, dtype=jnp.int32)

    loss = jax.block_until_ready(cross_entropy_loss_2d(outputs, targets))
    ref = jax.block_until_ready(_reference(outputs, targets))
    assert jnp.allclose(loss, ref, rtol=1e-5, atol=1e-5), (loss, ref)

    print("KERNEL_OK")
</pallas_src>

<mosaic_0001>
module attributes {stable_mosaic.version = 11 : i64} {
  func.func @_ce2d_kernel(%arg0: i32, %arg1: i32, %arg2: memref<1x4x256xf32, #tpu.memory_space<vmem>>, %arg3: memref<1x1x256xi32, #tpu.memory_space<vmem>>, %arg4: memref<1x1xf32, #tpu.memory_space<vmem>>, %arg5: memref<1x256xf32, #tpu.memory_space<vmem>>, %arg6: memref<1x256xf32, #tpu.memory_space<vmem>>) attributes {dimension_semantics = [#tpu.dimension_semantics<arbitrary>, #tpu.dimension_semantics<arbitrary>], iteration_bounds = array<i64: 2, 1>, scalar_prefetch = 0 : i64, scratch_operands = 2 : i64, tpu.core_type = #tpu.core_type<tc>, window_params = [{transform_indices = @transform_0, window_bounds = array<i64: 1, 4, 256>}, {transform_indices = @transform_1, window_bounds = array<i64: 1, 1, 256>}, {pipeline_mode = #tpu.pipeline_mode<synchronous>, transform_indices = @transform_2, window_bounds = array<i64: 1, 1>}]} {
    %c0_i32 = arith.constant 0 : i32
    %0 = arith.cmpi eq, %arg0, %c0_i32 : i32
    %c0_i32_0 = arith.constant 0 : i32
    %1 = arith.cmpi eq, %arg1, %c0_i32_0 : i32
    %2 = arith.andi %0, %1 : i1
    %3 = arith.extui %2 : i1 to i32
    %c0_i32_1 = arith.constant 0 : i32
    %4 = arith.cmpi ne, %3, %c0_i32_1 : i32
    scf.if %4 {
      %cst_22 = arith.constant 0.000000e+00 : f32
      %50 = vector.broadcast %cst_22 : f32 to vector<1x256xf32>
      %c0_23 = arith.constant 0 : index
      %c0_24 = arith.constant 0 : index
      %51 = vector.load %arg5[%c0_23, %c0_24] : memref<1x256xf32, #tpu.memory_space<vmem>>, vector<1x256xf32>
      tpu.vector_store %arg5[%c0_23, %c0_24], %50 {strides = array<i32>} : memref<1x256xf32, #tpu.memory_space<vmem>>, vector<1x256xf32>,
      %cst_25 = arith.constant 0.000000e+00 : f32
      %52 = vector.broadcast %cst_25 : f32 to vector<1x256xf32>
      %c0_26 = arith.constant 0 : index
      %c0_27 = arith.constant 0 : index
      %53 = vector.load %arg6[%c0_26, %c0_27] : memref<1x256xf32, #tpu.memory_space<vmem>>, vector<1x256xf32>
      tpu.vector_store %arg6[%c0_26, %c0_27], %52 {strides = array<i32>} : memref<1x256xf32, #tpu.memory_space<vmem>>, vector<1x256xf32>,
    } else {
    }
    %c0 = arith.constant 0 : index
    %c0_2 = arith.constant 0 : index
    %c0_3 = arith.constant 0 : index
    %5 = vector.load %arg2[%c0, %c0_2, %c0_3] : memref<1x4x256xf32, #tpu.memory_space<vmem>>, vector<1x4x256xf32>
    %6 = vector.shape_cast %5 : vector<1x4x256xf32> to vector<4x256xf32>
    %c0_4 = arith.constant 0 : index
    %c0_5 = arith.constant 0 : index
    %c0_6 = arith.constant 0 : index
    %7 = vector.load %arg3[%c0_4, %c0_5, %c0_6] : memref<1x1x256xi32, #tpu.memory_space<vmem>>, vector<1x1x256xi32>
    %8 = vector.shape_cast %7 : vector<1x1x256xi32> to vector<1x256xi32>
    %c256_i32 = arith.constant 256 : i32
    %9 = arith.muli %arg1, %c256_i32 : i32
    %10 = tpu.iota {dimensions = array<i32: 1>} : vector<1x256xi32>
    %11 = vector.broadcast %9 : i32 to vector<1x256xi32>
    %12 = arith.addi %11, %10 : vector<1x256xi32>
    %c256_i32_7 = arith.constant 256 : i32
    %13 = vector.broadcast %c256_i32_7 : i32 to vector<1x256xi32>
    %14 = arith.cmpi slt, %12, %13 : vector<1x256xi32>
    %c-100_i32 = arith.constant -100 : i32
    %15 = vector.broadcast %c-100_i32 : i32 to vector<1x256xi32>
    %16 = arith.cmpi ne, %8, %15 : vector<1x256xi32>
    %17 = arith.andi %14, %16 : vector<1x256xi1>
    %cst = arith.constant dense<0xFF800000> : vector<256xf32>
    %18 = vector.multi_reduction <maximumf>, %6, %cst [0] : vector<4x256xf32> to vector<256xf32>
    %19 = vector.shape_cast %18 : vector<256xf32> to vector<1x256xf32>
    %20 = vector.broadcast %19 : vector<1x256xf32> to vector<4x256xf32>
    %21 = arith.subf %6, %20 : vector<4x256xf32>
    %22 = math.exp %21 : vector<4x256xf32>
    %cst_8 = arith.constant dense<0.000000e+00> : vector<256xf32>
    %23 = vector.multi_reduction <add>, %22, %cst_8 [0] : vector<4x256xf32> to vector<256xf32>
    %24 = vector.shape_cast %23 : vector<256xf32> to vector<1x256xf32>
    %25 = math.log %24 : vector<1x256xf32>
    %26 = arith.addf %19, %25 : vector<1x256xf32>
    %27 = tpu.iota {dimensions = array<i32: 0>} : vector<4x256xi32>
    %28 = vector.broadcast %8 : vector<1x256xi32> to vector<4x256xi32>
    %29 = arith.cmpi eq, %27, %28 : vector<4x256xi32>
    %cst_9 = arith.constant 0.000000e+00 : f32
    %30 = vector.broadcast %cst_9 : f32 to vector<4x256xf32>
    %31 = arith.select %29, %6, %30 : vector<4x256xi1>, vector<4x256xf32>
    %cst_10 = arith.constant dense<0.000000e+00> : vector<256xf32>
    %32 = vector.multi_reduction <add>, %31, %cst_10 [0] : vector<4x256xf32> to vector<256xf32>
    %33 = vector.shape_cast %32 : vector<256xf32> to vector<1x256xf32>
    %c0_11 = arith.constant 0 : index
    %c0_12 = arith.constant 0 : index
    %34 = vector.load %arg5[%c0_11, %c0_12] : memref<1x256xf32, #tpu.memory_space<vmem>>, vector<1x256xf32>
    %35 = arith.subf %26, %33 : vector<1x256xf32>
    %cst_13 = arith.constant 0.000000e+00 : f32
    %36 = vector.broadcast %cst_13 : f32 to vector<1x256xf32>
    %37 = arith.select %17, %35, %36 : vector<1x256xi1>, vector<1x256xf32>
    %38 = arith.addf %34, %37 : vector<1x256xf32>
    %c0_14 = arith.constant 0 : index
    %c0_15 = arith.constant 0 : index
    %39 = vector.load %arg5[%c0_14, %c0_15] : memref<1x256xf32, #tpu.memory_space<vmem>>, vector<1x256xf32>
    tpu.vector_store %arg5[%c0_14, %c0_15], %38 {strides = array<i32>} : memref<1x256xf32, #tpu.memory_space<vmem>>, vector<1x256xf32>,
    %c0_16 = arith.constant 0 : index
    %c0_17 = arith.constant 0 : index
    %40 = vector.load %arg6[%c0_16, %c0_17] : memref<1x256xf32, #tpu.memory_space<vmem>>, vector<1x256xf32>
    %41 = arith.extui %17 : vector<1x256xi1> to vector<1x256xi32>
    %42 = arith.sitofp %41 : vector<1x256xi32> to vector<1x256xf32>
    %43 = arith.addf %40, %42 : vector<1x256xf32>
    %c0_18 = arith.constant 0 : index
    %c0_19 = arith.constant 0 : index
    %44 = vector.load %arg6[%c0_18, %c0_19] : memref<1x256xf32, #tpu.memory_space<vmem>>, vector<1x256xf32>
    tpu.vector_store %arg6[%c0_18, %c0_19], %43 {strides = array<i32>} : memref<1x256xf32, #tpu.memory_space<vmem>>, vector<1x256xf32>,
    %c1_i32 = arith.constant 1 : i32
    %45 = arith.cmpi eq, %arg0, %c1_i32 : i32
    %c0_i32_20 = arith.constant 0 : i32
    %46 = arith.cmpi eq, %arg1, %c0_i32_20 : i32
    %47 = arith.andi %45, %46 : i1
    %48 = arith.extui %47 : i1 to i32
    %c0_i32_21 = arith.constant 0 : i32
    %49 = arith.cmpi ne, %48, %c0_i32_21 : i32
    scf.if %49 {
      %c0_22 = arith.constant 0 : index
      %c0_23 = arith.constant 0 : index
      %50 = vector.load %arg5[%c0_22, %c0_23] : memref<1x256xf32, #tpu.memory_space<vmem>>, vector<1x256xf32>
      %51 = vector.shape_cast %50 : vector<1x256xf32> to vector<1x1x256xf32>
      %cst_24 = arith.constant dense<0.000000e+00> : vector<1xf32>
      %52 = vector.multi_reduction <add>, %51, %cst_24 [1, 2] : vector<1x1x256xf32> to vector<1xf32>
      %53 = vector.shape_cast %52 : vector<1xf32> to vector<1x1x1xf32>
      %54 = vector.extract %53[0, 0, 0] : f32 from vector<1x1x1xf32>
      %55 = vector.broadcast %54 : f32 to vector<1x1xf32>
      %c0_25 = arith.constant 0 : index
      %c0_26 = arith.constant 0 : index
      %56 = vector.load %arg6[%c0_25, %c0_26] : memref<1x256xf32, #tpu.memory_space<vmem>>, vector<1x256xf32>
      %57 = vector.shape_cast %56 : vector<1x256xf32> to vector<1x1x256xf32>
      %cst_27 = arith.constant dense<0.000000e+00> : vector<1xf32>
      %58 = vector.multi_reduction <add>, %57, %cst_27 [1, 2] : vector<1x1x256xf32> to vector<1xf32>
      %59 = vector.shape_cast %58 : vector<1xf32> to vector<1x1x1xf32>
      %60 = vector.extract %59[0, 0, 0] : f32 from vector<1x1x1xf32>
      %61 = vector.broadcast %60 : f32 to vector<1x1xf32>
      %62 = arith.divf %55, %61 : vector<1x1xf32>
      %c0_28 = arith.constant 0 : index
      %c0_29 = arith.constant 0 : index
      %63 = vector.load %arg4[%c0_28, %c0_29] : memref<1x1xf32, #tpu.memory_space<vmem>>, vector<1x1xf32>
      tpu.vector_store %arg4[%c0_28, %c0_29], %62 {strides = array<i32>} : memref<1x1xf32, #tpu.memory_space<vmem>>, vector<1x1xf32>,
    } else {
    }
    return
  }
  func.func @transform_0(%arg0: i32, %arg1: i32) -> (i32, i32, i32) {
    %c0_i32 = arith.constant 0 : i32
    %c0_i32_0 = arith.constant 0 : i32
    return %arg0, %c0_i32, %arg1 : i32, i32, i32
  }
  func.func @transform_1(%arg0: i32, %arg1: i32) -> (i32, i32, i32) {
    %c0_i32 = arith.constant 0 : i32
    %c0_i32_0 = arith.constant 0 : i32
    return %arg0, %c0_i32, %arg1 : i32, i32, i32
  }
  func.func @transform_2(%arg0: i32, %arg1: i32) -> (i32, i32) {
    %c0_i32 = arith.constant 0 : i32
    %c0_i32_0 = arith.constant 0 : i32
    %c0_i32_1 = arith.constant 0 : i32
    return %c0_i32, %c0_i32_0 : i32, i32
  }
}

</mosaic_0001>

<llo_original>
// kernel: tpu_custom_call.1
$region0: #{tpu_custom_call.1}
  #allocation0 [shape = 'u32[]', space=smem, size = 0x4, offset = 0x4, fixed_abs, tag = 'smem constant byte address 0x4 - core index']
  #allocation1 [shape = 'u32[144,128]{1,0:T(1,128)}', space=vmem, size = 0x12000, scoped, tag = 'internal scratch']
  #allocation2 [shape = 'f32[1,256]{1,0:T(1,128)}', space=vmem, size = 0x400, scoped, tag = 'scratch operand']
  #allocation3 [shape = 'f32[1,256]{1,0:T(1,128)}', space=vmem, size = 0x400, scoped, tag = 'scratch operand']
  %s0 = inlined_call_operand.hbm [shape: f32[2,4,256], index: 0, kind: input, shape index: {}]
  %s1 = inlined_call_operand.hbm [shape: s32[2,1,256], index: 1, kind: input, shape index: {}]
  %s2 = inlined_call_operand.hbm [shape: f32[1,1], index: 2, kind: output, shape index: {}]
  %s3 = sld [smem:[#allocation0]]
  $region57: #{tpu_custom_call.1} parent=0
    _
  %s5 = ssub.s32 1, %s3
  %s6 = scalar_select 0, %s5, %s3
  $region1: #{tpu_custom_call.1} parent=0
    #allocation4 [shape = 'u8[8192]{0}', space=vmem, size = 0x2000, scoped, tag = 'input window, operand 0']
    #allocation5 [shape = 's32[2]{0}', space=sflag, size = 0x8, scoped, tag = 'scoped memory for tpu_custom_call.1']
    #allocation6 [shape = 's32[2]{0}', space=sflag, size = 0x8, scoped, tag = 'scoped memory for tpu_custom_call.1']
    #allocation7 [shape = 'u8[2048]{0}', space=vmem, size = 0x800, scoped, tag = 'input window, operand 1']
    #allocation8 [shape = 's32[2]{0}', space=sflag, size = 0x8, scoped, tag = 'scoped memory for tpu_custom_call.1']
    #allocation9 [shape = 'u8[512]{0}', space=vmem, size = 0x400, scoped, tag = 'output window, operand 0, single buffered']
    %7 = vsyncpa [#allocation5], 0
    %s8 = scalar_lea.sflag [#allocation5], 1
    %9 = vsyncpa %s8, 0
    %10 = vsyncpa [#allocation8], 0
    %s11 = scalar_lea.sflag [#allocation8], 1
    %12 = vsyncpa %s11, 0
    %13 = vsyncpa [#allocation6], 0
    loop: start=0, step=1, limit=4
    $region2: #{tpu_custom_call.1} parent=1 // loop_pre_header
      _
    $region3: #{tpu_custom_call.1} parent=1 // loop_header
      %s15 = sphi 0, %s19
      %p16 = scmp.ge.s32.totalorder %s15, 4
      %s22 = sphi 0, %s34
      %s23 = sphi 0, %s30
      %s24 = sphi 0, %s22
      %s25 = sphi 0, %s23
      %s26 = sphi 0, %s24
      %s27 = sphi 0, %s25
      %s39 = sphi 0, %s41
      %s42 = sphi 0, %s39
      %s43 = sphi 0, %s42
      %s59 = sphi 0, %s43
      %s67 = sphi 0, %s69
      %s70 = sphi 0, %s67
      %s71 = sphi 0, %s70
      %s87 = sphi 0, %s71
      %s91 = sphi 0, %s91
      %s93 = sphi 0, %s91
      %s94 = sphi 0, %s93
      %s108 = sphi 0, %s94
    $region4: #{tpu_custom_call.1} parent=1 // loop_header_branch
      %18 = sbr.rel (%p16) target = $region8
    $region5: #{tpu_custom_call.1} parent=1 // loop_body
      %s20 = ssub.s32 %s15, 1
      %s21 = ssub.s32 %s15, 2
      %s28 = sadd.s32 1, %s23
      %p29 = scmp.ge.s32.totalorder %s28, 1
      %s30 = scalar_select %p29, 0, %s28
      %s31 = sadd.s32 1, %s22
      %s32 = scalar_select %p29, %s31, %s22
      %p33 = scmp.ge.s32.totalorder %s32, 2
      %s34 = scalar_select %p33, 0, %s32
      %s35 = ssub.s32 %s22, %s34
      %s36 = ssub.s32 %s23, %s30
      %s37 = sor.u32 %s35, %s36
      %p38 = scmp.eq.s32.totalorder %s37, 0
      %s40 = sadd.s32 %s39, 1
      %s41 = scalar_select %p38, %s39, %s40
      %p44 = pneg %p38
      %p45 = scmp.eq.s32.totalorder %s15, 1
      %p46 = por %p44, %p45
      %p47 = scmp.ne.s32.totalorder %s39, %s42
      %p48 = scmp.eq.s32.totalorder %s15, 0
      %p49 = por %p47, %p48
      %p50 = scmp.ne.s32.totalorder %s39, %s42
      %p51 = scmp.eq.s32.totalorder %s20, 1
      %p52 = por %p50, %p51
      %p53 = scmp.ne.s32.totalorder %s42, %s43
      %p54 = scmp.eq.s32.totalorder %s20, 0
      %p55 = por %p53, %p54
      %p56 = scmp.ne.s32.totalorder %s42, %s43
      %p57 = scmp.eq.s32.totalorder %s21, 1
      %p58 = por %p56, %p57
      %p60 = scmp.ne.s32.totalorder %s43, %s59
      %p61 = scmp.eq.s32.totalorder %s21, 0
      %p62 = por %p60, %p61
      %s63 = ssub.s32 %s22, %s34
      %s64 = ssub.s32 %s23, %s30
      %s65 = sor.u32 %s63, %s64
      %p66 = scmp.eq.s32.totalorder %s65, 0
      %s68 = sadd.s32 %s67, 1
      %s69 = scalar_select %p66, %s67, %s68
      %p72 = pneg %p66
      %p73 = scmp.eq.s32.totalorder %s15, 1
      %p74 = por %p72, %p73
      %p75 = scmp.ne.s32.totalorder %s67, %s70
      %p76 = scmp.eq.s32.totalorder %s15, 0
      %p77 = por %p75, %p76
      %p78 = scmp.ne.s32.totalorder %s67, %s70
      %p79 = scmp.eq.s32.totalorder %s20, 1
      %p80 = por %p78, %p79
      %p81 = scmp.ne.s32.totalorder %s70, %s71
      %p82 = scmp.eq.s32.totalorder %s20, 0
      %p83 = por %p81, %p82
      %p84 = scmp.ne.s32.totalorder %s70, %s71
      %p85 = scmp.eq.s32.totalorder %s21, 1
      %p86 = por %p84, %p85
      %p88 = scmp.ne.s32.totalorder %s71, %s87
      %p89 = scmp.eq.s32.totalorder %s21, 0
      %p90 = por %p88, %p89
      %s92 = sadd.s32 %s91, 1
      %p95 = scmp.eq.s32.totalorder %s15, 1
      %p96 = scmp.ne.s32.totalorder %s91, %s93
      %p97 = scmp.eq.s32.totalorder %s15, 0
      %p98 = por %p96, %p97
      %p99 = scmp.ne.s32.totalorder %s91, %s93
      %p100 = scmp.eq.s32.totalorder %s20, 1
      %p101 = por %p99, %p100
      %p102 = scmp.ne.s32.totalorder %s93, %s94
      %p103 = scmp.eq.s32.totalorder %s20, 0
      %p104 = por %p102, %p103
      %p105 = scmp.ne.s32.totalorder %s93, %s94
      %p106 = scmp.eq.s32.totalorder %s21, 1
      %p107 = por %p105, %p106
      %p109 = scmp.ne.s32.totalorder %s94, %s108
      %p110 = scmp.eq.s32.totalorder %s21, 0
      %p111 = por %p109, %p110
      %p112 = scmp.le.s32.totalorder 1, %s15
      %p113 = scmp.lt.s32.totalorder %s15, 3
      %p114 = pnand %p112, %p113
      %p115 = pneg %p114
      // Predicated region
      $region9: #{tpu_custom_call.1} parent=5 // pred_check
        _
      $region10: #{tpu_custom_call.1} parent=5 // pred_check_branch
        %117 = sbr.rel (%p114) target = $region12
      $region11: #{tpu_custom_call.1} parent=5 // pred_region
        %s118 = ssub.s32 %s15, 1
      $region12: #{tpu_custom_call.1} parent=5 // pred_fallthru
        _
      %p119 = scmp.lt.s32.totalorder %s15, 2
      // Predicated region
      $region13: #{tpu_custom_call.1} parent=5 // pred_check
        %p120 = pneg %p119
      $region14: #{tpu_custom_call.1} parent=5 // pred_check_branch
        %122 = sbr.rel (%p120) target = $region16
      $region15: #{tpu_custom_call.1} parent=5 // pred_region
        // Predicated region
        $region17: #{tpu_custom_call.1} parent=15 // pred_check
          %p123 = pneg %p49
        $region18: #{tpu_custom_call.1} parent=15 // pred_check_branch
          %125 = sbr.rel (%p123) target = $region20
        $region19: #{tpu_custom_call.1} parent=15 // pred_region
          %s126 = sand.u32 %s39, 1
          %s127 = scalar_lea.sflag [#allocation5], %s126
          %s128 = sand.u32 %s39, 1
          %s129 = smul.addr %s128, 8
          %s130 = scalar_lea.vmem [#allocation4], %s129
          %s131 = smul.u32 2, %s23
          %s133 = ssub.s32 128, 128
          %134 = vsyncadd %s127, %s133
          %s135 = smul.addr %s22, 2
          %s136 = sadd.s32 %s131, %s135
          %s137 = smul.addr %s136, 64
          %s138 = scalar_lea.hbm %s0, %s137
          %s140 = sshll.u32 %s130, 4
          %s141 = int_to_ptr.vmem [resolvable:$true] %s140
          %143 = dma.hbm_to_vmem [thread:$0]  %s138, 128, %s141, %s127
        $region20: #{tpu_custom_call.1} parent=15 // pred_fallthru
          _
        // Predicated region
        $region21: #{tpu_custom_call.1} parent=15 // pred_check
          %p144 = pneg %p77
        $region22: #{tpu_custom_call.1} parent=15 // pred_check_branch
          %146 = sbr.rel (%p144) target = $region24
        $region23: #{tpu_custom_call.1} parent=15 // pred_region
          %s147 = sand.u32 %s67, 1
          %s148 = scalar_lea.sflag [#allocation8], %s147
          %s149 = sand.u32 %s67, 1
          %s150 = smul.addr %s149, 2
          %s151 = scalar_lea.vmem [#allocation7], %s150
          %s152 = smul.u32 2, %s23
          %s154 = ssub.s32 32, 32
          %155 = vsyncadd %s148, %s154
          %s156 = smul.addr %s22, 2
          %s157 = sadd.s32 %s152, %s156
          %s158 = smul.addr %s157, 16
          %s159 = scalar_lea.hbm %s1, %s158
          %s161 = sshll.u32 %s151, 4
          %s162 = int_to_ptr.vmem [resolvable:$true] %s161
          %164 = dma.hbm_to_vmem [thread:$0]  %s159, 32, %s162, %s148
        $region24: #{tpu_custom_call.1} parent=15 // pred_fallthru
          _
      $region16: #{tpu_custom_call.1} parent=5 // pred_fallthru
        _
      %p165 = scmp.le.s32.totalorder 1, %s15
      %p166 = scmp.lt.s32.totalorder %s15, 3
      %p167 = pnand %p165, %p166
      %p168 = pneg %p167
      // Predicated region
      $region25: #{tpu_custom_call.1} parent=5 // pred_check
        _
      $region26: #{tpu_custom_call.1} parent=5 // pred_check_branch
        %170 = sbr.rel (%p167) target = $region28
      $region27: #{tpu_custom_call.1} parent=5 // pred_region
        %s171 = ssub.s32 %s15, 1
        %s172 = sand.u32 %s42, 1
        %s173 = scalar_lea.sflag [#allocation5], %s172
        %s174 = sand.u32 %s42, 1
        %s175 = smul.addr %s174, 8
        %s176 = scalar_lea.vmem [#allocation4], %s175
        // Predicated region
        $region29: #{tpu_custom_call.1} parent=27 // pred_check
          %p177 = pneg %p55
        $region30: #{tpu_custom_call.1} parent=27 // pred_check_branch
          %179 = sbr.rel (%p177) target = $region32
        $region31: #{tpu_custom_call.1} parent=27 // pred_region
          %180 = dma.done %s173, 128
        $region32: #{tpu_custom_call.1} parent=27 // pred_fallthru
          _
        %s181 = sand.u32 %s70, 1
        %s182 = scalar_lea.sflag [#allocation8], %s181
        %s183 = sand.u32 %s70, 1
        %s184 = smul.addr %s183, 2
        %s185 = scalar_lea.vmem [#allocation7], %s184
        // Predicated region
        $region33: #{tpu_custom_call.1} parent=27 // pred_check
          %p186 = pneg %p83
        $region34: #{tpu_custom_call.1} parent=27 // pred_check_branch
          %188 = sbr.rel (%p186) target = $region36
        $region35: #{tpu_custom_call.1} parent=27 // pred_region
          %189 = dma.done %s182, 32
        $region36: #{tpu_custom_call.1} parent=27 // pred_fallthru
          _
        %s190 = sand.u32 %s42, 1
        %s191 = scalar_lea.sflag [#allocation5], %s190
        %s192 = sand.u32 %s42, 1
        %s193 = smul.addr %s192, 8
        %s194 = scalar_lea.vmem [#allocation4], %s193
        %p195 = pneg %p55
        %p196 = pneg %p52
        %s197 = sand.u32 %s70, 1
        %s198 = scalar_lea.sflag [#allocation8], %s197
        %s199 = sand.u32 %s70, 1
        %s200 = smul.addr %s199, 2
        %s201 = scalar_lea.vmem [#allocation7], %s200
        %p202 = pneg %p83
        %p203 = pneg %p80
        %p204 = pneg %p104
        %p205 = pneg %p101
        %s206 = smul.u32 2, %s25
        %s207 = smul.u32 2, %s25
        %p208 = scmp.eq.s32.totalorder %s24, 0
        %p209 = scmp.eq.s32.totalorder %s25, 0
        %p210 = pnand %p208, %p209
        %p211 = pneg %p210
        // Predicated region
        $region37: #{tpu_custom_call.1} parent=27 // pred_check
          _
        $region38: #{tpu_custom_call.1} parent=27 // pred_check_branch
          %213 = sbr.rel (%p210) target = $region40
        $region39: #{tpu_custom_call.1} parent=27 // pred_region
          %v214 = vlaneseq
          %vm215 = vcmp.ge.s32.totalorder %v214, 0
          %vm216 = vcmp.lt.s32.totalorder %v214, 256
          %vm217 = vmand %vm215, %vm216
          %218 = vst.msk [vmem:[#allocation2] sm:$0x3] %vm217, 0.0
          %219 = vst.msk [vmem:[#allocation3] sm:$0x3] %vm217, 0.0
        $region40: #{tpu_custom_call.1} parent=27 // pred_fallthru
          _
        %v220 = vld [vmem:[%s176] sm:$0xff]
        %v221 = vld [vmem:[%s185] sm:$0x3]
        %s222 = smul.u32 %s25, 256
        %v223 = vlaneseq
        %v224 = vand.u32 %v223, 127
        %v225 = vadd.s32 %v224, 128
        %v226 = vstv %s222
        %v227 = vadd.s32 %v226, %v224
        %v228 = vadd.s32 %v226, %v225
        %vm229 = vcmp.lt.s32.totalorder %v227, 256
        %vm230 = vcmp.lt.s32.totalorder %v228, 256
        %vm231 = vcmp.ne.s32.totalorder %v221, 4294967196
        %v232 = vsel %vm231, 1, 0
        %v233 = vlaneseq
        %v234 = vshrl.u32 %v233, 7
        %v235 = vsub.s32 0, %v234
        %v236 = vrot.slane %v232, %v235
        %v237 = vlaneseq
        %v238 = vshrl.u32 %v237, 7
        %v239 = vsub.s32 1, %v238
        %v240 = vrot.slane %v232, %v239
        %vm241 = vcmp.ne.s32.totalorder %v236, 0
        %vm242 = vcmp.ne.s32.totalorder %v240, 0
        %vm243 = vmand %vm229, %vm241
        %vm244 = vmand %vm230, %vm242
        %v246 = vcombine.high %v220, %v220
        %vm248 = vcmask 1043456
        %v249 = vsel %vm248, %v220, -inf
        %v250 = vrot.slane %v249, 4
        %v251 = vmax.f32 %v249, %v250
        %v252 = vrot.slane %v251, 2
        %v253 = vmax.f32 %v251, %v252
        %v254 = vrot.slane %v253, 1
        %v255 = vmax.f32 %v253, %v254
        %v256 = vsel %vm248, %v246, -inf
        %v257 = vrot.slane %v256, 4
        %v258 = vmax.f32 %v256, %v257
        %v259 = vrot.slane %v258, 2
        %v260 = vmax.f32 %v258, %v259
        %v261 = vrot.slane %v260, 1
        %v262 = vmax.f32 %v260, %v261
        %v265 = vcombine.low %v255, %v262
        %v267 = vsub.f32 %v220, %v265
        %v268 = vmul.f32 %v267, 1.442695
        %v269 = vpow.pop %v268
        %v271 = vcombine.high %v269, %v269
        %v273 = vsel %vm248, %v269, 0.0
        %v274 = vrot.slane %v273, 4
        %v275 = vadd.f32 %v273, %v274
        %v276 = vrot.slane %v275, 2
        %v277 = vadd.f32 %v275, %v276
        %v278 = vrot.slane %v277, 1
        %v279 = vadd.f32 %v277, %v278
        %v280 = vsel %vm248, %v271, 0.0
        %v281 = vrot.slane %v280, 4
        %v282 = vadd.f32 %v280, %v281
        %v283 = vrot.slane %v282, 2
        %v284 = vadd.f32 %v282, %v283
        %v285 = vrot.slane %v284, 1
        %v286 = vadd.f32 %v284, %v285
        %v287 = vlog2.pop %v279
        %v288 = vmul.f32 %v287, 0.6931472
        %v289 = vlog2.pop %v286
        %v290 = vmul.f32 %v289, 0.6931472
        %v291 = vadd.f32 %v255, %v288
        %v292 = vadd.f32 %v262, %v290
        %v293 = vlaneseq
        %v294 = vshrl.u32 %v293, 7
        %v295 = vlaneseq
        %v296 = vshrl.u32 %v295, 7
        %v297 = vsub.s32 0, %v296
        %v298 = vrot.slane %v221, %v297
        %v299 = vlaneseq
        %v300 = vshrl.u32 %v299, 7
        %v301 = vsub.s32 1, %v300
        %v302 = vrot.slane %v221, %v301
        %vm303 = vcmp.eq.s32.totalorder %v294, %v298
        %vm304 = vcmp.eq.s32.totalorder %v294, %v302
        %v305 = vsel %vm303, %v220, 0.0
        %v306 = vsel %vm304, %v246, 0.0
        %v307 = vsel %vm248, %v305, 0.0
        %v308 = vrot.slane %v307, 4
        %v309 = vadd.f32 %v307, %v308
        %v310 = vrot.slane %v309, 2
        %v311 = vadd.f32 %v309, %v310
        %v312 = vrot.slane %v311, 1
        %v313 = vadd.f32 %v311, %v312
        %v314 = vsel %vm248, %v306, 0.0
        %v315 = vrot.slane %v314, 4
        %v316 = vadd.f32 %v314, %v315
        %v317 = vrot.slane %v316, 2
        %v318 = vadd.f32 %v316, %v317
        %v319 = vrot.slane %v318, 1
        %v320 = vadd.f32 %v318, %v319
        %v321 = vld [vmem:[#allocation2] sm:$0x3]
        %v322 = vsub.f32 %v291, %v313
        %v323 = vsub.f32 %v292, %v320
        %v324 = vsel %vm243, %v322, 0.0
        %v325 = vsel %vm244, %v323, 0.0
        %v328 = vcombine.low %v324, %v325
        %v330 = vunpack.c.l.s4 1966171168
        %v331 = vunpack.c.0.s8 %v330
        %v332 = vlaneseq
        %v333 = vshrl.u32 %v332, 7
        %v334 = vsub.s32 %v331, %v333
        %v335 = vrot.slane %v328, %v334
        %v337 = vunpack.c.l.s4 1966171168
        %v338 = vunpack.c.0.s8 %v337
        %v339 = vlaneseq
        %v340 = vshrl.u32 %v339, 7
        %v341 = vsub.s32 %v338, %v340
        %v342 = vrot.slane %v335, %v341
        %v344 = vadd.f32 %v321, %v342
        %v345 = vlaneseq
        %vm346 = vcmp.ge.s32.totalorder %v345, 0
        %vm347 = vcmp.lt.s32.totalorder %v345, 256
        %vm348 = vmand %vm346, %vm347
        %349 = vst.msk [vmem:[#allocation2] sm:$0x3] %vm348, %v344
        %v350 = vld [vmem:[#allocation3] sm:$0x3]
        %v351 = vsel %vm243, 1, 0
        %v352 = vsel %vm244, 1, 0
        %v353 = vcvt.s32.f32 %v351
        %v354 = vcvt.s32.f32 %v352
        %v357 = vcombine.low %v353, %v354
        %v359 = vunpack.c.l.s4 1966171168
        %v360 = vunpack.c.0.s8 %v359
        %v361 = vlaneseq
        %v362 = vshrl.u32 %v361, 7
        %v363 = vsub.s32 %v360, %v362
        %v364 = vrot.slane %v357, %v363
        %v366 = vunpack.c.l.s4 1966171168
        %v367 = vunpack.c.0.s8 %v366
        %v368 = vlaneseq
        %v369 = vshrl.u32 %v368, 7
        %v370 = vsub.s32 %v367, %v369
        %v371 = vrot.slane %v364, %v370
        %v373 = vadd.f32 %v350, %v371
        %374 = vst.msk [vmem:[#allocation3] sm:$0x3] %vm348, %v373
        %p375 = scmp.eq.s32.totalorder %s24, 1
        %p376 = pnand %p375, %p209
        %p377 = pneg %p376
        // Predicated region
        $region41: #{tpu_custom_call.1} parent=27 // pred_check
          _
        $region42: #{tpu_custom_call.1} parent=27 // pred_check_branch
          %379 = sbr.rel (%p376) target = $region44
        $region43: #{tpu_custom_call.1} parent=27 // pred_region
          %v380 = vld [vmem:[#allocation2] sm:$0x3]
          %v382 = vlaneseq
          %v383 = vshrl.u32 %v382, 7
          %v384 = vsub.s32 0, %v383
          %v385 = vrot.slane %v380, %v384
          %v386 = vlaneseq
          %v387 = vshrl.u32 %v386, 7
          %v388 = vsub.s32 1, %v387
          %v389 = vrot.slane %v380, %v388
          %vm392 = vcmask 1040384
          %v393 = vsel %vm392, %v385, 0.0
          %v394 = vsel %vm392, %v389, 0.0
          %v395 = vadd.f32 %v393, %v394
          %396 = vadd.xlane.f32.xlu0 %v395
          %v397 = vpop.xlane.xlu0 %396
          %v398 = vrot.slane %v397, 4
          %v399 = vadd.f32 %v397, %v398
          %v400 = vrot.slane %v399, 2
          %v401 = vadd.f32 %v399, %v400
          %v402 = vrot.slane %v401, 1
          %v403 = vadd.f32 %v401, %v402
          %s404 = vtos %v403
          %v405 = vstv %s404
          %v406 = vld [vmem:[#allocation3] sm:$0x3]
          %v408 = vlaneseq
          %v409 = vshrl.u32 %v408, 7
          %v410 = vsub.s32 0, %v409
          %v411 = vrot.slane %v406, %v410
          %v412 = vlaneseq
          %v413 = vshrl.u32 %v412, 7
          %v414 = vsub.s32 1, %v413
          %v415 = vrot.slane %v406, %v414
          %v418 = vsel %vm392, %v411, 0.0
          %v419 = vsel %vm392, %v415, 0.0
          %v420 = vadd.f32 %v418, %v419
          %421 = vadd.xlane.f32.xlu0 %v420
          %v422 = vpop.xlane.xlu0 %421
          %v423 = vrot.slane %v422, 4
          %v424 = vadd.f32 %v422, %v423
          %v425 = vrot.slane %v424, 2
          %v426 = vadd.f32 %v424, %v425
          %v427 = vrot.slane %v426, 1
          %v428 = vadd.f32 %v426, %v427
          %s429 = vtos %v428
          %v430 = vstv %s429
          %v431 = vrcp.pop %v430
          %v432 = vmul.f32 %v405, %v431
          %vm433 = vcmask 0
          %434 = vst.msk [vmem:[#allocation9] sm:$0x1] %vm433, %v432
        $region44: #{tpu_custom_call.1} parent=27 // pred_fallthru
          _
        // Predicated region
        $region45: #{tpu_custom_call.1} parent=27 // pred_check
          %p435 = pneg %p101
        $region46: #{tpu_custom_call.1} parent=27 // pred_check_branch
          %437 = sbr.rel (%p435) target = $region48
        $region47: #{tpu_custom_call.1} parent=27 // pred_region
          %s439 = ssub.s32 16, 16
          %440 = vsyncadd [#allocation6], %s439
          %s442 = sshll.u32 [#allocation9], 4
          %s443 = int_to_ptr.vmem [resolvable:$true] %s442
          %445 = dma.vmem_to_hbm [thread:$0]  %s443, 16, %s2, [#allocation6]
        $region48: #{tpu_custom_call.1} parent=27 // pred_fallthru
          _
        // Predicated region
        $region49: #{tpu_custom_call.1} parent=27 // pred_check
          %p446 = pneg %p101
        $region50: #{tpu_custom_call.1} parent=27 // pred_check_branch
          %448 = sbr.rel (%p446) target = $region52
        $region51: #{tpu_custom_call.1} parent=27 // pred_region
          %449 = dma.done [#allocation6], 16
        $region52: #{tpu_custom_call.1} parent=27 // pred_fallthru
          _
      $region28: #{tpu_custom_call.1} parent=5 // pred_fallthru
        _
      %p450 = scmp.le.s32.totalorder 2, %s15
      // Predicated region
      $region53: #{tpu_custom_call.1} parent=5 // pred_check
        %p451 = pneg %p450
      $region54: #{tpu_custom_call.1} parent=5 // pred_check_branch
        %453 = sbr.rel (%p451) target = $region56
      $region55: #{tpu_custom_call.1} parent=5 // pred_region
        %s454 = ssub.s32 %s15, 2
      $region56: #{tpu_custom_call.1} parent=5 // pred_fallthru
        _
    $region6: #{tpu_custom_call.1} parent=1 // loop_footer
      %s19 = sadd.s32 1, %s15
    $region7: #{tpu_custom_call.1} parent=1 // loop_footer_branch
      %14 = sbr.rel target = $region3
    $region8: #{tpu_custom_call.1} parent=1 // loop_exit
      _
    %455 = vsyncpa [#allocation5], 1
    %s456 = scalar_lea.sflag [#allocation5], 1
    %457 = vsyncpa %s456, 1
    %458 = vsyncpa [#allocation8], 1
    %s459 = scalar_lea.sflag [#allocation8], 1
    %460 = vsyncpa %s459, 1
    %461 = vsyncpa [#allocation6], 1
    %s462 = scalar_lea.sflag [#allocation6], 1
    %463 = vsyncpa %s462, 1

</llo_original>
